<compile_context>
chip_gen: v7x
topology: tpu7x:2x2x1
jax: 0.10.0
libtpu: 0.0.40
codegen_flags: <defaults>
</compile_context>

<pallas_src>
import functools

import jax
import jax.numpy as jnp
from jax import lax
from jax.experimental import pallas as pl
from jax.experimental.pallas import tpu as pltpu

_LANES = 128
_SUBLANES = 8
_MAX_BLOCK_ROWS = 8192              # (8192, 128) f32 = 4 MiB per input block
_NUM_CORE_SPLITS = 2                # "parallel" outer axis -> both TCs on v7x
_VMEM_LIMIT_BYTES = 32 * 1024 * 1024  # fits double-buffered 4 MiB blocks on v5e too


def _tversky_kernel(pred_ref, gt_ref, tp_ref, sg_ref, *,
                    total_rows, block_rows, chunks_per_split, mask_from_chunk):
    c = pl.program_id(0)   # core-split index ("parallel")
    j = pl.program_id(1)   # chunk index within the split ("arbitrary")

    @pl.when(j == 0)
    def _init():
        tp_ref[...] = jnp.zeros_like(tp_ref)
        sg_ref[...] = jnp.zeros_like(sg_ref)

    # Logical chunk owned by this (split, step).  The input index_map clamps
    # the DMA to the last real chunk, so out-of-range logical chunks re-read
    # valid data and their contribution is zeroed by the tail mask below.
    logical_chunk = c * chunks_per_split + j

    pred = pred_ref[...].astype(jnp.float32)
    gt = gt_ref[...].astype(jnp.float32)

    def _accumulate(prod, g):
        # Per-tile tree reduction to one (8, 128) partial: the reshape matches
        # the native (8, 128) tiling (layout-free) and the axis-0 sum is pure
        # VPU adds -- no XLU, no block-sized accumulator traffic.
        tile_tp = jnp.sum(
            prod.reshape(block_rows // _SUBLANES, _SUBLANES, _LANES), axis=0)
        tile_sg = jnp.sum(
            g.reshape(block_rows // _SUBLANES, _SUBLANES, _LANES), axis=0)
        tp_ref[...] += tile_tp[None]
        sg_ref[...] += tile_sg[None]

    # Fast path: fully in-bounds chunk, no masking.
    @pl.when(logical_chunk < mask_from_chunk)
    def _full_tile():
        _accumulate(pred * gt * gt, gt)

    # Tail path: partial last chunk and/or clamped duplicate chunks.  Mask the
    # product (not just gt): out-of-bounds rows of the edge block contain
    # unspecified VMEM data and may hold NaN/Inf in pred.
    @pl.when(logical_chunk >= mask_from_chunk)
    def _tail_tile():
        row0 = logical_chunk * block_rows
        rows = lax.broadcasted_iota(jnp.int32, (block_rows, _LANES), 0) + row0
        valid = rows < total_rows
        g = jnp.where(valid, gt, 0.0)
        prod = jnp.where(valid, pred * g * g, 0.0)
        _accumulate(prod, g)


def _crop(x, w, h, d):
    # torch _crop from origin (x=y=z=0) to (w, h, d) along dims 2, 3, 4.
    # Slicing clamps, exactly like torch/NumPy.
    return x[:, :, :w, :h, :d]


def tversky_loss(predicted, ground_truth, smooth=1e-10, alpha=0.1, beta=0.9):
    # Mutual crop to common spatial extents (matches the torch module).
    predicted = _crop(predicted, ground_truth.shape[2],
                      ground_truth.shape[3], ground_truth.shape[4])
    ground_truth = _crop(ground_truth, predicted.shape[2],
                         predicted.shape[3], predicted.shape[4])

    pred_flat = predicted.reshape(-1)
    gt_flat = ground_truth.reshape(-1)
    n = pred_flat.shape[0]

    # Pad (only if needed) to a lane multiple; zero padding contributes 0.
    n_lane = ((n + _LANES - 1) // _LANES) * _LANES
    if n_lane != n:
        pred_flat = jnp.pad(pred_flat, (0, n_lane - n))
        gt_flat = jnp.pad(gt_flat, (0, n_lane - n))
    m = n_lane // _LANES
    pred2d = pred_flat.reshape(m, _LANES)
    gt2d = gt_flat.reshape(m, _LANES)

    block_rows = min(_MAX_BLOCK_ROWS,
                     ((m + _SUBLANES - 1) // _SUBLANES) * _SUBLANES)
    total_chunks = -(-m // block_rows)                      # ceil div
    num_splits = min(_NUM_CORE_SPLITS, total_chunks)
    chunks_per_split = -(-total_chunks // num_splits)       # ceil div

    # First logical chunk index that needs the in-kernel row mask:
    #  - the last real chunk, if it is partial,
    #  - otherwise only the clamped duplicate chunks (>= total_chunks).
    if m % block_rows == 0:
        mask_from_chunk = total_chunks
    else:
        mask_from_chunk = total_chunks - 1

    def in_map(c, j):
        # Clamp so the DMA never starts fully past the array; extra logical
        # chunks are masked to zero inside the kernel.
        return (jnp.minimum(c * chunks_per_split + j, total_chunks - 1), 0)

    kernel = functools.partial(_tversky_kernel,
                               total_rows=m,
                               block_rows=block_rows,
                               chunks_per_split=chunks_per_split,
                               mask_from_chunk=mask_from_chunk)

    tp_out, sg_out = pl.pallas_call(
        kernel,
        out_shape=(
            jax.ShapeDtypeStruct((num_splits, _SUBLANES, _LANES), jnp.float32),
            jax.ShapeDtypeStruct((num_splits, _SUBLANES, _LANES), jnp.float32),
        ),
        grid_spec=pltpu.PrefetchScalarGridSpec(
            num_scalar_prefetch=0,
            grid=(num_splits, chunks_per_split),
            in_specs=[
                pl.BlockSpec((block_rows, _LANES), in_map),
                pl.BlockSpec((block_rows, _LANES), in_map),
            ],
            out_specs=[
                pl.BlockSpec((1, _SUBLANES, _LANES), lambda c, j: (c, 0, 0)),
                pl.BlockSpec((1, _SUBLANES, _LANES), lambda c, j: (c, 0, 0)),
            ],
        ),
        compiler_params=pltpu.CompilerParams(
            dimension_semantics=("parallel", "arbitrary"),
            vmem_limit_bytes=_VMEM_LIMIT_BYTES),
    )(pred2d, gt2d)

    tp = jnp.sum(tp_out)
    sum_gt = jnp.sum(sg_out)
    fn = sum_gt - tp
    # logical_not(gt) * (pred * gt) is identically 0; only .add(1e-10) remains.
    fp = 1e-10
    tversky = (tp + smooth) / (tp + alpha * fp + beta * fn + smooth)
    return 1.0 - tversky


def tversky_loss_ref(predicted, ground_truth, smooth=1e-10, alpha=0.1, beta=0.9):
    # Literal JAX transcription of the torch module (keeps the fp term).
    predicted = _crop(predicted, ground_truth.shape[2],
                      ground_truth.shape[3], ground_truth.shape[4])
    ground_truth = _crop(ground_truth, predicted.shape[2],
                         predicted.shape[3], predicted.shape[4])
    predicted = predicted.astype(jnp.float32) * ground_truth.astype(jnp.float32)
    gt = ground_truth.astype(jnp.float32)
    tp = jnp.sum(predicted * gt)
    fn = jnp.sum((1.0 - predicted) * gt)
    fp = jnp.sum(jnp.where(gt == 0.0, predicted, 0.0)) + 1e-10
    tversky = (tp + smooth) / (tp + alpha * fp + beta * fn + smooth)
    return 1.0 - tversky


def _run_case(key, pred_shape, gt_shape):
    k1, k2 = jax.random.split(key)
    pred = jax.nn.sigmoid(jax.random.normal(k1, pred_shape, dtype=jnp.float32))
    gt = jax.random.bernoulli(k2, p=0.3, shape=gt_shape).astype(jnp.float32)
    loss = jax.block_until_ready(tversky_loss(pred, gt))
    ref = tversky_loss_ref(pred, gt)
    assert jnp.allclose(loss, ref, atol=1e-5, rtol=1e-4), (pred_shape, loss, ref)


if __name__ == "__main__":
    key = jax.random.PRNGKey(0)
    k0, k1, k2, k3, k4 = jax.random.split(key, 5)

    # Small 5-D shapes: (N, C, D1, D2, D3) -- single exact tile.
    _run_case(k0, (2, 4, 8, 8, 8), (2, 4, 8, 8, 8))

    # Mismatched spatial extents -> mutual crop + lane padding.
    _run_case(k1, (1, 3, 9, 10, 6), (1, 3, 7, 9, 5))

    # Tiny input -> block bigger than the array, exercises the NaN-safe tail mask.
    _run_case(k2, (1, 1, 4, 5, 7), (1, 1, 4, 5, 7))

    # Exactly one full 8192-row chunk, single split.
    _run_case(k3, (2, 8, 32, 32, 64), (2, 8, 32, 32, 64))

    # 3 chunks -> two core-splits, partial last chunk + one clamped duplicate.
    _run_case(k4, (2, 8, 40, 64, 64), (2, 8, 40, 64, 64))

    print("KERNEL_OK")
</pallas_src>

<mosaic_0001>
module attributes {stable_mosaic.version = 11 : i64} {
  func.func @_tversky_kernel(%arg0: i32, %arg1: i32, %arg2: memref<32x128xf32, #tpu.memory_space<vmem>>, %arg3: memref<32x128xf32, #tpu.memory_space<vmem>>, %arg4: memref<1x8x128xf32, #tpu.memory_space<vmem>>, %arg5: memref<1x8x128xf32, #tpu.memory_space<vmem>>) attributes {dimension_semantics = [#tpu.dimension_semantics<parallel>, #tpu.dimension_semantics<arbitrary>], iteration_bounds = array<i64: 1, 1>, scalar_prefetch = 0 : i64, scratch_operands = 0 : i64, tpu.core_type = #tpu.core_type<tc>, window_params = [{transform_indices = @transform_0, window_bounds = array<i64: 32, 128>}, {transform_indices = @transform_1, window_bounds = array<i64: 32, 128>}, {transform_indices = @transform_2, window_bounds = array<i64: 1, 8, 128>}, {transform_indices = @transform_3, window_bounds = array<i64: 1, 8, 128>}]} {
    %c0_i32 = arith.constant 0 : i32
    %0 = arith.cmpi eq, %arg1, %c0_i32 : i32
    %1 = arith.extui %0 : i1 to i32
    %c0_i32_0 = arith.constant 0 : i32
    %2 = arith.cmpi ne, %1, %c0_i32_0 : i32
    scf.if %2 {
      %cst = arith.constant 0.000000e+00 : f32
      %13 = vector.broadcast %cst : f32 to vector<1x8x128xf32>
      %c0_8 = arith.constant 0 : index
      %c0_9 = arith.constant 0 : index
      %c0_10 = arith.constant 0 : index
      %14 = vector.load %arg4[%c0_8, %c0_9, %c0_10] : memref<1x8x128xf32, #tpu.memory_space<vmem>>, vector<1x8x128xf32>
      tpu.vector_store %arg4[%c0_8, %c0_9, %c0_10], %13 {strides = array<i32>} : memref<1x8x128xf32, #tpu.memory_space<vmem>>, vector<1x8x128xf32>,
      %cst_11 = arith.constant 0.000000e+00 : f32
      %15 = vector.broadcast %cst_11 : f32 to vector<1x8x128xf32>
      %c0_12 = arith.constant 0 : index
      %c0_13 = arith.constant 0 : index
      %c0_14 = arith.constant 0 : index
      %16 = vector.load %arg5[%c0_12, %c0_13, %c0_14] : memref<1x8x128xf32, #tpu.memory_space<vmem>>, vector<1x8x128xf32>
      tpu.vector_store %arg5[%c0_12, %c0_13, %c0_14], %15 {strides = array<i32>} : memref<1x8x128xf32, #tpu.memory_space<vmem>>, vector<1x8x128xf32>,
    } else {
    }
    %c1_i32 = arith.constant 1 : i32
    %3 = arith.muli %arg0, %c1_i32 : i32
    %4 = arith.addi %3, %arg1 : i32
    %c0 = arith.constant 0 : index
    %c0_1 = arith.constant 0 : index
    %5 = vector.load %arg2[%c0, %c0_1] : memref<32x128xf32, #tpu.memory_space<vmem>>, vector<32x128xf32>
    %c0_2 = arith.constant 0 : index
    %c0_3 = arith.constant 0 : index
    %6 = vector.load %arg3[%c0_2, %c0_3] : memref<32x128xf32, #tpu.memory_space<vmem>>, vector<32x128xf32>
    %c1_i32_4 = arith.constant 1 : i32
    %7 = arith.cmpi slt, %4, %c1_i32_4 : i32
    %8 = arith.extui %7 : i1 to i32
    %c0_i32_5 = arith.constant 0 : i32
    %9 = arith.cmpi ne, %8, %c0_i32_5 : i32
    scf.if %9 {
      %13 = arith.mulf %5, %6 : vector<32x128xf32>
      %14 = arith.mulf %13, %6 : vector<32x128xf32>
      %15 = vector.shape_cast %14 : vector<32x128xf32> to vector<4x8x128xf32>
      %cst = arith.constant dense<0.000000e+00> : vector<8x128xf32>
      %16 = vector.multi_reduction <add>, %15, %cst [0] : vector<4x8x128xf32> to vector<8x128xf32>
      %17 = vector.shape_cast %6 : vector<32x128xf32> to vector<4x8x128xf32>
      %cst_8 = arith.constant dense<0.000000e+00> : vector<8x128xf32>
      %18 = vector.multi_reduction <add>, %17, %cst_8 [0] : vector<4x8x128xf32> to vector<8x128xf32>
      %c0_9 = arith.constant 0 : index
      %c0_10 = arith.constant 0 : index
      %c0_11 = arith.constant 0 : index
      %19 = vector.load %arg4[%c0_9, %c0_10, %c0_11] : memref<1x8x128xf32, #tpu.memory_space<vmem>>, vector<1x8x128xf32>
      %20 = vector.shape_cast %16 : vector<8x128xf32> to vector<1x8x128xf32>
      %21 = arith.addf %19, %20 : vector<1x8x128xf32>
      %c0_12 = arith.constant 0 : index
      %c0_13 = arith.constant 0 : index
      %c0_14 = arith.constant 0 : index
      %22 = vector.load %arg4[%c0_12, %c0_13, %c0_14] : memref<1x8x128xf32, #tpu.memory_space<vmem>>, vector<1x8x128xf32>
      tpu.vector_store %arg4[%c0_12, %c0_13, %c0_14], %21 {strides = array<i32>} : memref<1x8x128xf32, #tpu.memory_space<vmem>>, vector<1x8x128xf32>,
      %c0_15 = arith.constant 0 : index
      %c0_16 = arith.constant 0 : index
      %c0_17 = arith.constant 0 : index
      %23 = vector.load %arg5[%c0_15, %c0_16, %c0_17] : memref<1x8x128xf32, #tpu.memory_space<vmem>>, vector<1x8x128xf32>
      %24 = vector.shape_cast %18 : vector<8x128xf32> to vector<1x8x128xf32>
      %25 = arith.addf %23, %24 : vector<1x8x128xf32>
      %c0_18 = arith.constant 0 : index
      %c0_19 = arith.constant 0 : index
      %c0_20 = arith.constant 0 : index
      %26 = vector.load %arg5[%c0_18, %c0_19, %c0_20] : memref<1x8x128xf32, #tpu.memory_space<vmem>>, vector<1x8x128xf32>
      tpu.vector_store %arg5[%c0_18, %c0_19, %c0_20], %25 {strides = array<i32>} : memref<1x8x128xf32, #tpu.memory_space<vmem>>, vector<1x8x128xf32>,
    } else {
    }
    %c1_i32_6 = arith.constant 1 : i32
    %10 = arith.cmpi sge, %4, %c1_i32_6 : i32
    %11 = arith.extui %10 : i1 to i32
    %c0_i32_7 = arith.constant 0 : i32
    %12 = arith.cmpi ne, %11, %c0_i32_7 : i32
    scf.if %12 {
      %c32_i32 = arith.constant 32 : i32
      %13 = arith.muli %4, %c32_i32 : i32
      %14 = tpu.iota {dimensions = array<i32: 0>} : vector<32x128xi32>
      %15 = vector.broadcast %13 : i32 to vector<32x128xi32>
      %16 = arith.addi %14, %15 : vector<32x128xi32>
      %c32_i32_8 = arith.constant 32 : i32
      %17 = vector.broadcast %c32_i32_8 : i32 to vector<32x128xi32>
      %18 = arith.cmpi slt, %16, %17 : vector<32x128xi32>
      %cst = arith.constant 0.000000e+00 : f32
      %19 = vector.broadcast %cst : f32 to vector<32x128xf32>
      %20 = arith.select %18, %6, %19 : vector<32x128xi1>, vector<32x128xf32>
      %21 = arith.mulf %5, %20 : vector<32x128xf32>
      %22 = arith.mulf %21, %20 : vector<32x128xf32>
      %cst_9 = arith.constant 0.000000e+00 : f32
      %23 = vector.broadcast %cst_9 : f32 to vector<32x128xf32>
      %24 = arith.select %18, %22, %23 : vector<32x128xi1>, vector<32x128xf32>
      %25 = vector.shape_cast %24 : vector<32x128xf32> to vector<4x8x128xf32>
      %cst_10 = arith.constant dense<0.000000e+00> : vector<8x128xf32>
      %26 = vector.multi_reduction <add>, %25, %cst_10 [0] : vector<4x8x128xf32> to vector<8x128xf32>
      %27 = vector.shape_cast %20 : vector<32x128xf32> to vector<4x8x128xf32>
      %cst_11 = arith.constant dense<0.000000e+00> : vector<8x128xf32>
      %28 = vector.multi_reduction <add>, %27, %cst_11 [0] : vector<4x8x128xf32> to vector<8x128xf32>
      %c0_12 = arith.constant 0 : index
      %c0_13 = arith.constant 0 : index
      %c0_14 = arith.constant 0 : index
      %29 = vector.load %arg4[%c0_12, %c0_13, %c0_14] : memref<1x8x128xf32, #tpu.memory_space<vmem>>, vector<1x8x128xf32>
      %30 = vector.shape_cast %26 : vector<8x128xf32> to vector<1x8x128xf32>
      %31 = arith.addf %29, %30 : vector<1x8x128xf32>
      %c0_15 = arith.constant 0 : index
      %c0_16 = arith.constant 0 : index
      %c0_17 = arith.constant 0 : index
      %32 = vector.load %arg4[%c0_15, %c0_16, %c0_17] : memref<1x8x128xf32, #tpu.memory_space<vmem>>, vector<1x8x128xf32>
      tpu.vector_store %arg4[%c0_15, %c0_16, %c0_17], %31 {strides = array<i32>} : memref<1x8x128xf32, #tpu.memory_space<vmem>>, vector<1x8x128xf32>,
      %c0_18 = arith.constant 0 : index
      %c0_19 = arith.constant 0 : index
      %c0_20 = arith.constant 0 : index
      %33 = vector.load %arg5[%c0_18, %c0_19, %c0_20] : memref<1x8x128xf32, #tpu.memory_space<vmem>>, vector<1x8x128xf32>
      %34 = vector.shape_cast %28 : vector<8x128xf32> to vector<1x8x128xf32>
      %35 = arith.addf %33, %34 : vector<1x8x128xf32>
      %c0_21 = arith.constant 0 : index
      %c0_22 = arith.constant 0 : index
      %c0_23 = arith.constant 0 : index
      %36 = vector.load %arg5[%c0_21, %c0_22, %c0_23] : memref<1x8x128xf32, #tpu.memory_space<vmem>>, vector<1x8x128xf32>
      tpu.vector_store %arg5[%c0_21, %c0_22, %c0_23], %35 {strides = array<i32>} : memref<1x8x128xf32, #tpu.memory_space<vmem>>, vector<1x8x128xf32>,
    } else {
    }
    return
  }
  func.func @transform_0(%arg0: i32, %arg1: i32) -> (i32, i32) {
    %c1_i32 = arith.constant 1 : i32
    %0 = arith.muli %arg0, %c1_i32 : i32
    %1 = arith.addi %0, %arg1 : i32
    %c0_i32 = arith.constant 0 : i32
    %2 = arith.minsi %1, %c0_i32 : i32
    %c0_i32_0 = arith.constant 0 : i32
    %c0_i32_1 = arith.constant 0 : i32
    return %2, %c0_i32_0 : i32, i32
  }
  func.func @transform_1(%arg0: i32, %arg1: i32) -> (i32, i32) {
    %c1_i32 = arith.constant 1 : i32
    %0 = arith.muli %arg0, %c1_i32 : i32
    %1 = arith.addi %0, %arg1 : i32
    %c0_i32 = arith.constant 0 : i32
    %2 = arith.minsi %1, %c0_i32 : i32
    %c0_i32_0 = arith.constant 0 : i32
    %c0_i32_1 = arith.constant 0 : i32
    return %2, %c0_i32_0 : i32, i32
  }
  func.func @transform_2(%arg0: i32, %arg1: i32) -> (i32, i32, i32) {
    %c0_i32 = arith.constant 0 : i32
    %c0_i32_0 = arith.constant 0 : i32
    %c0_i32_1 = arith.constant 0 : i32
    return %arg0, %c0_i32, %c0_i32_0 : i32, i32, i32
  }
  func.func @transform_3(%arg0: i32, %arg1: i32) -> (i32, i32, i32) {
    %c0_i32 = arith.constant 0 : i32
    %c0_i32_0 = arith.constant 0 : i32
    %c0_i32_1 = arith.constant 0 : i32
    return %arg0, %c0_i32, %c0_i32_0 : i32, i32, i32
  }
}

</mosaic_0001>

<llo_original>
// kernel: tpu_custom_call.1
$region0: #{tpu_custom_call.1}
  #allocation0 [shape = 'u32[]', space=smem, size = 0x4, offset = 0x4, fixed_abs, tag = 'smem constant byte address 0x4 - core index']
  #allocation1 [shape = 'u32[144,128]{1,0:T(1,128)}', space=vmem, size = 0x12000, scoped, tag = 'internal scratch']
  %s0 = inlined_call_operand.hbm [shape: f32[32,128], index: 0, kind: input, shape index: {}]
  %s1 = inlined_call_operand.hbm [shape: f32[32,128], index: 1, kind: input, shape index: {}]
  %s2 = inlined_call_operand.hbm [shape: f32[1,8,128], index: 2, kind: output, shape index: {0}]
  %s3 = inlined_call_operand.hbm [shape: f32[1,8,128], index: 3, kind: output, shape index: {1}]
  %4 = xla_tuple %s2, %s3
  %s5 = sld [smem:[#allocation0]]
  $region46: #{tpu_custom_call.1} parent=0
    _
  %s7 = ssub.s32 1, %s5
  %s8 = scalar_select 0, %s7, %s5
  $region1: #{tpu_custom_call.1} parent=0
    #allocation2 [shape = 'u8[16384]{0}', space=vmem, size = 0x4000, scoped, tag = 'input window, operand 0, single buffered']
    #allocation3 [shape = 's32[1]{0}', space=sflag, size = 0x4, scoped, tag = 'scoped memory for tpu_custom_call.1']
    #allocation4 [shape = 's32[1]{0}', space=sflag, size = 0x4, scoped, tag = 'scoped memory for tpu_custom_call.1']
    #allocation5 [shape = 'u8[16384]{0}', space=vmem, size = 0x4000, scoped, tag = 'input window, operand 1, single buffered']
    #allocation6 [shape = 's32[1]{0}', space=sflag, size = 0x4, scoped, tag = 'scoped memory for tpu_custom_call.1']
    #allocation7 [shape = 'u8[4096]{0}', space=vmem, size = 0x1000, scoped, tag = 'output window, operand 0, single buffered']
    #allocation8 [shape = 'u8[4096]{0}', space=vmem, size = 0x1000, scoped, tag = 'output window, operand 1, single buffered']
    #allocation9 [shape = 's32[1]{0}', space=sflag, size = 0x4, scoped, tag = 'scoped memory for tpu_custom_call.1']
    %9 = vsyncpa [#allocation3], 0
    %10 = vsyncpa [#allocation6], 0
    %11 = vsyncpa [#allocation4], 0
    %12 = vsyncpa [#allocation9], 0
    // Predicated region
    $region2: #{tpu_custom_call.1} parent=1 // pred_check
      _
    $region3: #{tpu_custom_call.1} parent=1 // pred_check_branch
      %14 = sbr.rel (0) target = $region5
    $region4: #{tpu_custom_call.1} parent=1 // pred_region
      %s15 = sadd.s32 0, 0
      %p16 = scmp.lt.s32.totalorder %s15, 0
      %s17 = scalar_select %p16, %s15, 0
      %s18 = smul.u32 4, %s17
      %s20 = ssub.s32 512, 512
      %21 = vsyncadd [#allocation3], %s20
      %s22 = smul.addr %s18, 128
      %s23 = scalar_lea.hbm %s0, %s22
      %s24 = sshll.u32 [#allocation2], 4
      %s25 = int_to_ptr.vmem [resolvable:$true] %s24
      %30 = dma.hbm_to_vmem [thread:$0]  %s23, 512, %s25, [#allocation3], 128, 128, 8
    $region5: #{tpu_custom_call.1} parent=1 // pred_fallthru
      _
    // Predicated region
    $region6: #{tpu_custom_call.1} parent=1 // pred_check
      _
    $region7: #{tpu_custom_call.1} parent=1 // pred_check_branch
      %32 = sbr.rel (0) target = $region9
    $region8: #{tpu_custom_call.1} parent=1 // pred_region
      %s33 = sadd.s32 0, 0
      %p34 = scmp.lt.s32.totalorder %s33, 0
      %s35 = scalar_select %p34, %s33, 0
      %s36 = smul.u32 4, %s35
      %s38 = ssub.s32 512, 512
      %39 = vsyncadd [#allocation6], %s38
      %s40 = smul.addr %s36, 128
      %s41 = scalar_lea.hbm %s1, %s40
      %s42 = sshll.u32 [#allocation5], 4
      %s43 = int_to_ptr.vmem [resolvable:$true] %s42
      %48 = dma.hbm_to_vmem [thread:$0]  %s41, 512, %s43, [#allocation6], 128, 128, 8
    $region9: #{tpu_custom_call.1} parent=1 // pred_fallthru
      _
    // Predicated region
    $region10: #{tpu_custom_call.1} parent=1 // pred_check
      _
    $region11: #{tpu_custom_call.1} parent=1 // pred_check_branch
      %50 = sbr.rel (0) target = $region13
    $region12: #{tpu_custom_call.1} parent=1 // pred_region
      %51 = dma.done [#allocation3], 512
    $region13: #{tpu_custom_call.1} parent=1 // pred_fallthru
      _
    // Predicated region
    $region14: #{tpu_custom_call.1} parent=1 // pred_check
      _
    $region15: #{tpu_custom_call.1} parent=1 // pred_check_branch
      %53 = sbr.rel (0) target = $region17
    $region16: #{tpu_custom_call.1} parent=1 // pred_region
      %54 = dma.done [#allocation6], 512
    $region17: #{tpu_custom_call.1} parent=1 // pred_fallthru
      _
    %s55 = sadd.s32 0, 0
    %p56 = scmp.lt.s32.totalorder %s55, 0
    %s57 = scalar_select %p56, %s55, 0
    %s58 = smul.u32 4, %s57
    %s59 = sadd.s32 0, 0
    %p60 = scmp.lt.s32.totalorder %s59, 0
    %s61 = scalar_select %p60, %s59, 0
    %s62 = smul.u32 4, %s61
    %p63 = scmp.eq.s32.totalorder 0, 0
    // Predicated region
    $region18: #{tpu_custom_call.1} parent=1 // pred_check
      %p64 = pneg %p63
    $region19: #{tpu_custom_call.1} parent=1 // pred_check_branch
      %66 = sbr.rel (%p64) target = $region21
    $region20: #{tpu_custom_call.1} parent=1 // pred_region
      %67 = vst [vmem:[#allocation7] sm:$0xff] 0.0
      %68 = vst [vmem:[#allocation8] sm:$0xff] 0.0
    $region21: #{tpu_custom_call.1} parent=1 // pred_fallthru
      _
    %s69 = sadd.s32 0, 0
    %v70 = vld [vmem:[#allocation2] sm:$0xff]
    %v71 = vld [vmem:[#allocation2 + $0x8] sm:$0xff]
    %v72 = vld [vmem:[#allocation2 + $0x10] sm:$0xff]
    %v73 = vld [vmem:[#allocation2 + $0x18] sm:$0xff]
    %v74 = vld [vmem:[#allocation5] sm:$0xff]
    %v75 = vld [vmem:[#allocation5 + $0x8] sm:$0xff]
    %v76 = vld [vmem:[#allocation5 + $0x10] sm:$0xff]
    %v77 = vld [vmem:[#allocation5 + $0x18] sm:$0xff]
    %p78 = scmp.lt.s32.totalorder %s69, 1
    // Predicated region
    $region22: #{tpu_custom_call.1} parent=1 // pred_check
      %p79 = pneg %p78
    $region23: #{tpu_custom_call.1} parent=1 // pred_check_branch
      %81 = sbr.rel (%p79) target = $region25
    $region24: #{tpu_custom_call.1} parent=1 // pred_region
      %v82 = vmul.f32 %v70, %v74
      %v83 = vmul.f32 %v71, %v75
      %v84 = vmul.f32 %v72, %v76
      %v85 = vmul.f32 %v73, %v77
      %v86 = vmul.f32 %v82, %v74
      %v87 = vmul.f32 %v83, %v75
      %v88 = vmul.f32 %v84, %v76
      %v89 = vmul.f32 %v85, %v77
      %v90 = vadd.f32 %v86, %v87
      %v91 = vadd.f32 %v90, %v88
      %v92 = vadd.f32 %v91, %v89
      %v93 = vadd.f32 %v74, %v75
      %v94 = vadd.f32 %v93, %v76
      %v95 = vadd.f32 %v94, %v77
      %v96 = vld [vmem:[#allocation7] sm:$0xff]
      %v97 = vadd.f32 %v96, %v92
      %98 = vst [vmem:[#allocation7] sm:$0xff] %v97
      %v99 = vld [vmem:[#allocation8] sm:$0xff]
      %v100 = vadd.f32 %v99, %v95
      %101 = vst [vmem:[#allocation8] sm:$0xff] %v100
    $region25: #{tpu_custom_call.1} parent=1 // pred_fallthru
      _
    %p102 = scmp.ge.s32.totalorder %s69, 1
    // Predicated region
    $region26: #{tpu_custom_call.1} parent=1 // pred_check
      %p103 = pneg %p102
    $region27: #{tpu_custom_call.1} parent=1 // pred_check_branch
      %105 = sbr.rel (%p103) target = $region29
    $region28: #{tpu_custom_call.1} parent=1 // pred_region
      %s106 = smul.u32 %s69, 32
      %v107 = vlaneseq
      %v108 = vshrl.u32 %v107, 7
      %v109 = vadd.s32 %v108, 8
      %v110 = vadd.s32 %v108, 16
      %v111 = vadd.s32 %v108, 24
      %v112 = vstv %s106
      %v113 = vadd.s32 %v108, %v112
      %v114 = vadd.s32 %v109, %v112
      %v115 = vadd.s32 %v110, %v112
      %v116 = vadd.s32 %v111, %v112
      %vm117 = vcmp.lt.s32.totalorder %v113, 32
      %vm118 = vcmp.lt.s32.totalorder %v114, 32
      %vm119 = vcmp.lt.s32.totalorder %v115, 32
      %vm120 = vcmp.lt.s32.totalorder %v116, 32
      %v121 = vsel %vm117, %v74, 0.0
      %v122 = vsel %vm118, %v75, 0.0
      %v123 = vsel %vm119, %v76, 0.0
      %v124 = vsel %vm120, %v77, 0.0
      %v125 = vmul.f32 %v70, %v121
      %v126 = vmul.f32 %v71, %v122
      %v127 = vmul.f32 %v72, %v123
      %v128 = vmul.f32 %v73, %v124
      %v129 = vmul.f32 %v125, %v121
      %v130 = vmul.f32 %v126, %v122
      %v131 = vmul.f32 %v127, %v123
      %v132 = vmul.f32 %v128, %v124
      %v133 = vsel %vm117, %v129, 0.0
      %v134 = vsel %vm118, %v130, 0.0
      %v135 = vsel %vm119, %v131, 0.0
      %v136 = vsel %vm120, %v132, 0.0
      %v137 = vadd.f32 %v133, %v134
      %v138 = vadd.f32 %v137, %v135
      %v139 = vadd.f32 %v138, %v136
      %v140 = vadd.f32 %v121, %v122
      %v141 = vadd.f32 %v140, %v123
      %v142 = vadd.f32 %v141, %v124
      %v143 = vld [vmem:[#allocation7] sm:$0xff]
      %v144 = vadd.f32 %v143, %v139
      %145 = vst [vmem:[#allocation7] sm:$0xff] %v144
      %v146 = vld [vmem:[#allocation8] sm:$0xff]
      %v147 = vadd.f32 %v146, %v142
      %148 = vst [vmem:[#allocation8] sm:$0xff] %v147
    $region29: #{tpu_custom_call.1} parent=1 // pred_fallthru
      _
    // Predicated region
    $region30: #{tpu_custom_call.1} parent=1 // pred_check
      _
    $region31: #{tpu_custom_call.1} parent=1 // pred_check_branch
      %150 = sbr.rel (0) target = $region33
    $region32: #{tpu_custom_call.1} parent=1 // pred_region
      %s152 = ssub.s32 128, 128
      %153 = vsyncadd [#allocation4], %s152
      %s155 = sshll.u32 [#allocation7], 4
      %s156 = int_to_ptr.vmem [resolvable:$true] %s155
      %158 = dma.vmem_to_hbm [thread:$0]  %s156, 128, %s2, [#allocation4]
    $region33: #{tpu_custom_call.1} parent=1 // pred_fallthru
      _
    // Predicated region
    $region34: #{tpu_custom_call.1} parent=1 // pred_check
      _
    $region35: #{tpu_custom_call.1} parent=1 // pred_check_branch
      %160 = sbr.rel (0) target = $region37
    $region36: #{tpu_custom_call.1} parent=1 // pred_region
      %s162 = ssub.s32 128, 128
      %163 = vsyncadd [#allocation9], %s162
      %s165 = sshll.u32 [#allocation8], 4
      %s166 = int_to_ptr.vmem [resolvable:$true] %s165
      %168 = dma.vmem_to_hbm [thread:$0]  %s166, 128, %s3, [#allocation9]
    $region37: #{tpu_custom_call.1} parent=1 // pred_fallthru
      _
    // Predicated region
    $region38: #{tpu_custom_call.1} parent=1 // pred_check
      _
    $region39: #{tpu_custom_call.1} parent=1 // pred_check_branch
      %170 = sbr.rel (0) target = $region41
    $region40: #{tpu_custom_call.1} parent=1 // pred_region
      %171 = dma.done [#allocation4], 128
    $region41: #{tpu_custom_call.1} parent=1 // pred_fallthru
      _
    // Predicated region
    $region42: #{tpu_custom_call.1} parent=1 // pred_check
      _
    $region43: #{tpu_custom_call.1} parent=1 // pred_check_branch
      %173 = sbr.rel (0) target = $region45
    $region44: #{tpu_custom_call.1} parent=1 // pred_region
      %174 = dma.done [#allocation9], 128
    $region45: #{tpu_custom_call.1} parent=1 // pred_fallthru
      _
    %175 = vsyncpa [#allocation3], 1
    %176 = vsyncpa [#allocation6], 1
    %177 = vsyncpa [#allocation4], 1
    %178 = vsyncpa [#allocation9], 1

</llo_original>
